<compile_context>
chip_gen: v7x
topology: tpu7x:2x2x1
jax: 0.10.0
libtpu: 0.0.40
codegen_flags: <defaults>
</compile_context>

<pallas_src>
import functools

import jax
import jax.numpy as jnp
from jax import lax
from jax.experimental import pallas as pl
from jax.experimental.pallas import tpu as pltpu

_LANE = 128


def _cross_entropy_kernel(logits_ref, target_ref, out_ref, *,
                          n_total, mask_remainder):
    """One batch tile: lane-dense store of the tile's summed NLL."""
    logits_raw = logits_ref[...]                               # (TN, C), input dtype
    tgt = target_ref[...]                                       # (TN, 1) int32
    tn, c = logits_raw.shape

    logits = logits_raw.astype(jnp.float32)

    # Numerically stable logsumexp along the class axis. (logits - row_max)
    # feeds exactly one reduction, so no reused (TN, C) f32 temporary.
    row_max = jnp.max(logits, axis=-1, keepdims=True)           # (TN, 1)
    sum_exp = jnp.sum(jnp.exp(logits - row_max), axis=-1, keepdims=True)

    # Target-class logit via masked select on the raw-dtype logits (exactly
    # one nonzero per row -> exact even for bf16). Keep this a true select so
    # garbage/NaN logits in padded rows can never leak in.
    col_ids = lax.broadcasted_iota(jnp.int32, (tn, c), 1)       # (TN, C)
    target_logit = jnp.sum(
        jnp.where(col_ids == tgt, logits_raw, jnp.zeros_like(logits_raw)),
        axis=-1, keepdims=True, dtype=jnp.float32)              # (TN, 1)

    # -log_softmax(logits)[i, tgt[i]] = log(sum_exp) + row_max - logit_tgt
    nll = jnp.log(sum_exp) + row_max - target_logit              # (TN, 1)

    if mask_remainder:
        # Zero out rows past the true batch size (padded remainder tile).
        row_ids = (pl.program_id(0) * tn
                   + lax.broadcasted_iota(jnp.int32, (tn, 1), 0))
        nll = jnp.where(row_ids < n_total, nll, 0.0)

    # Lane-dense store: block partial sum broadcast across all 128 lanes.
    out_ref[...] = jnp.full((1, 1, _LANE), jnp.sum(nll), dtype=jnp.float32)


def _vmem_capacity_bytes():
    try:
        return int(pltpu.get_tpu_info().vmem_capacity_bytes)
    except Exception:
        return 64 << 20  # conservative default: v7x physical VMEM


def _choose_row_tile(n, padded_c, itemsize):
    """Biggest row tile whose (lane-padded) footprint fits the per-buffer budget."""
    vmem_cap = _vmem_capacity_bytes()
    # 8 MiB per buffer on 64 MiB parts (v7x), 16 MiB on 128 MiB parts (v5e/v6e).
    budget_bytes = max(4 << 20, vmem_cap // 8)
    bytes_per_row = padded_c * itemsize + _LANE * 4   # logits row + lane-padded target
    tn = budget_bytes // max(1, bytes_per_row)
    tn = max(8, (tn // 8) * 8)
    return n if tn >= n else tn


def cross_entropy_loss(output, target, *, row_tile=None, force_pallas=False):
    """Pallas equivalent of nn.CrossEntropyLoss()(output, target).

    output: (N, C) float array of logits (any float dtype; kept as-is in HBM).
    target: (N,) integer class indices in [0, C).
    returns: scalar float32 loss (mean reduction).
    """
    n, c = output.shape
    itemsize = jnp.dtype(output.dtype).itemsize
    padded_c = pl.cdiv(c, _LANE) * _LANE

    # Tiny problems: fixed pallas_call launch cost dominates -> pure JAX.
    if (not force_pallas and row_tile is None
            and n * padded_c * itemsize < (256 << 10)):
        log_probs = jax.nn.log_softmax(output.astype(jnp.float32), axis=-1)
        picked = jnp.take_along_axis(
            log_probs, target.astype(jnp.int32)[:, None], axis=-1)
        return -jnp.mean(picked)

    tn = row_tile if row_tile is not None else _choose_row_tile(n, padded_c, itemsize)
    tn = min(tn, n)
    num_blocks = pl.cdiv(n, tn)
    mask_remainder = (n % tn) != 0

    target2d = target.astype(jnp.int32).reshape(n, 1)

    # VMEM limit: double-buffered (logits + target + out) tiles plus headroom,
    # capped below the chip's physical VMEM (generation-aware).
    vmem_cap = _vmem_capacity_bytes()
    tile_bytes = tn * padded_c * itemsize + tn * _LANE * 4 + _LANE * 4
    vmem_limit = int(max(16 << 20,
                         min(vmem_cap - (8 << 20),
                             max(4 * tile_bytes, 32 << 20))))

    kernel = functools.partial(_cross_entropy_kernel,
                               n_total=n, mask_remainder=mask_remainder)

    partials = pl.pallas_call(
        kernel,
        out_shape=jax.ShapeDtypeStruct((num_blocks, 1, _LANE), jnp.float32),
        grid_spec=pltpu.PrefetchScalarGridSpec(
            num_scalar_prefetch=0,
            grid=(num_blocks,),
            in_specs=[
                pl.BlockSpec((tn, c), lambda i: (i, 0)),   # logits tile (input dtype)
                pl.BlockSpec((tn, 1), lambda i: (i, 0)),   # target tile (int32)
            ],
            out_specs=pl.BlockSpec((1, 1, _LANE), lambda i: (i, 0, 0)),
        ),
        compiler_params=pltpu.CompilerParams(
            dimension_semantics=("parallel",),   # v7x: split blocks over 2 TCs
            vmem_limit_bytes=vmem_limit,
        ),
    )(output, target2d)

    # Each block wrote its partial sum broadcast across 128 lanes; take lane 0,
    # sum across blocks, and divide by the *global* N (reduction='mean').
    return jnp.sum(partials[:, 0, 0]) / jnp.float32(n)


if __name__ == "__main__":
    key = jax.random.PRNGKey(0)
    k_logits, k_target = jax.random.split(key)

    # Small shapes consistent with a classifier head: batch=20, classes=32.
    N, C = 20, 32
    output = jax.random.normal(k_logits, (N, C), dtype=jnp.float32)
    target = jax.random.randint(k_target, (N,), 0, C, dtype=jnp.int32)

    # Pure-JAX reference (same math as torch nn.CrossEntropyLoss, mean reduction).
    log_probs = jax.nn.log_softmax(output, axis=-1)
    ref = -jnp.mean(log_probs[jnp.arange(N), target])

    # 1) Default path (tiny problem -> pure-JAX fallback).
    loss_auto = jax.block_until_ready(cross_entropy_loss(output, target))
    assert jnp.allclose(loss_auto, ref, atol=1e-5, rtol=1e-5), (loss_auto, ref)

    # 2) Pallas kernel, single full block (auto tile sizing).
    loss_pallas = jax.block_until_ready(
        cross_entropy_loss(output, target, force_pallas=True))
    assert jnp.allclose(loss_pallas, ref, atol=1e-5, rtol=1e-5), (loss_pallas, ref)

    # 3) Pallas kernel, multi-block path with a padded remainder tile
    #    (grid=3, N % TN != 0 -> masking branch exercised).
    loss_tiled = jax.block_until_ready(
        cross_entropy_loss(output, target, row_tile=8))
    assert jnp.allclose(loss_tiled, ref, atol=1e-5, rtol=1e-5), (loss_tiled, ref)

    print("KERNEL_OK")
</pallas_src>

<mosaic_0001>
module attributes {stable_mosaic.version = 11 : i64} {
  func.func @_cross_entropy_kernel(%arg0: i32, %arg1: memref<20x32xf32, #tpu.memory_space<vmem>>, %arg2: memref<20x1xi32, #tpu.memory_space<vmem>>, %arg3: memref<1x1x128xf32, #tpu.memory_space<vmem>>) attributes {dimension_semantics = [#tpu.dimension_semantics<parallel>], iteration_bounds = array<i64: 1>, scalar_prefetch = 0 : i64, scratch_operands = 0 : i64, tpu.core_type = #tpu.core_type<tc>, window_params = [{transform_indices = @transform_0, window_bounds = array<i64: 20, 32>}, {transform_indices = @transform_1, window_bounds = array<i64: 20, 1>}, {transform_indices = @transform_2, window_bounds = array<i64: 1, 1, 128>}]} {
    %c0 = arith.constant 0 : index
    %c0_0 = arith.constant 0 : index
    %0 = vector.load %arg1[%c0, %c0_0] : memref<20x32xf32, #tpu.memory_space<vmem>>, vector<20x32xf32>
    %c0_1 = arith.constant 0 : index
    %c0_2 = arith.constant 0 : index
    %1 = vector.load %arg2[%c0_1, %c0_2] : memref<20x1xi32, #tpu.memory_space<vmem>>, vector<20x1xi32>
    %cst = arith.constant dense<0xFF800000> : vector<20xf32>
    %2 = vector.multi_reduction <maximumf>, %0, %cst [1] : vector<20x32xf32> to vector<20xf32>
    %3 = vector.shape_cast %2 : vector<20xf32> to vector<20x1xf32>
    %4 = vector.broadcast %3 : vector<20x1xf32> to vector<20x32xf32>
    %5 = arith.subf %0, %4 : vector<20x32xf32>
    %6 = math.exp %5 : vector<20x32xf32>
    %cst_3 = arith.constant dense<0.000000e+00> : vector<20xf32>
    %7 = vector.multi_reduction <add>, %6, %cst_3 [1] : vector<20x32xf32> to vector<20xf32>
    %8 = vector.shape_cast %7 : vector<20xf32> to vector<20x1xf32>
    %9 = tpu.iota {dimensions = array<i32: 1>} : vector<20x32xi32>
    %10 = vector.broadcast %1 : vector<20x1xi32> to vector<20x32xi32>
    %11 = arith.cmpi eq, %9, %10 : vector<20x32xi32>
    %cst_4 = arith.constant 0.000000e+00 : f32
    %12 = vector.broadcast %cst_4 : f32 to vector<20x32xf32>
    %13 = arith.select %11, %0, %12 : vector<20x32xi1>, vector<20x32xf32>
    %cst_5 = arith.constant dense<0.000000e+00> : vector<20xf32>
    %14 = vector.multi_reduction <add>, %13, %cst_5 [1] : vector<20x32xf32> to vector<20xf32>
    %15 = vector.shape_cast %14 : vector<20xf32> to vector<20x1xf32>
    %16 = math.log %8 : vector<20x1xf32>
    %17 = arith.addf %16, %3 : vector<20x1xf32>
    %18 = arith.subf %17, %15 : vector<20x1xf32>
    %19 = vector.shape_cast %18 : vector<20x1xf32> to vector<1x20x1xf32>
    %cst_6 = arith.constant dense<0.000000e+00> : vector<1xf32>
    %20 = vector.multi_reduction <add>, %19, %cst_6 [1, 2] : vector<1x20x1xf32> to vector<1xf32>
    %21 = vector.shape_cast %20 : vector<1xf32> to vector<1x1x1xf32>
    %22 = vector.extract %21[0, 0, 0] : f32 from vector<1x1x1xf32>
    %23 = vector.broadcast %22 : f32 to vector<1x1x128xf32>
    %c0_7 = arith.constant 0 : index
    %c0_8 = arith.constant 0 : index
    %c0_9 = arith.constant 0 : index
    %24 = vector.load %arg3[%c0_7, %c0_8, %c0_9] : memref<1x1x128xf32, #tpu.memory_space<vmem>>, vector<1x1x128xf32>
    tpu.vector_store %arg3[%c0_7, %c0_8, %c0_9], %23 {strides = array<i32>} : memref<1x1x128xf32, #tpu.memory_space<vmem>>, vector<1x1x128xf32>,
    return
  }
  func.func @transform_0(%arg0: i32) -> (i32, i32) {
    %c0_i32 = arith.constant 0 : i32
    %c0_i32_0 = arith.constant 0 : i32
    return %arg0, %c0_i32 : i32, i32
  }
  func.func @transform_1(%arg0: i32) -> (i32, i32) {
    %c0_i32 = arith.constant 0 : i32
    %c0_i32_0 = arith.constant 0 : i32
    return %arg0, %c0_i32 : i32, i32
  }
  func.func @transform_2(%arg0: i32) -> (i32, i32, i32) {
    %c0_i32 = arith.constant 0 : i32
    %c0_i32_0 = arith.constant 0 : i32
    %c0_i32_1 = arith.constant 0 : i32
    return %arg0, %c0_i32, %c0_i32_0 : i32, i32, i32
  }
}

</mosaic_0001>

<llo_original>
// kernel: tpu_custom_call.1
$region0: #{tpu_custom_call.1}
  #allocation0 [shape = 'u32[]', space=smem, size = 0x4, offset = 0x4, fixed_abs, tag = 'smem constant byte address 0x4 - core index']
  #allocation1 [shape = 'u32[144,128]{1,0:T(1,128)}', space=vmem, size = 0x12000, scoped, tag = 'internal scratch']
  %s0 = inlined_call_operand.vmem [shape: f32[20,32], index: 0, kind: input, shape index: {}]
  %s1 = inlined_call_operand.vmem [shape: s32[20,1], index: 1, kind: input, shape index: {}]
  %s2 = inlined_call_operand.hbm [shape: f32[1,1,128], index: 2, kind: output, shape index: {}]
  %s3 = sld [smem:[#allocation0]]
  $region18: #{tpu_custom_call.1} parent=0
    _
  %s5 = ssub.s32 1, %s3
  %s6 = scalar_select 0, %s5, %s3
  $region1: #{tpu_custom_call.1} parent=0
    #allocation2 [shape = 'u8[512]{0}', space=vmem, size = 0x400, scoped, tag = 'output window, operand 0, single buffered']
    #allocation3 [shape = 's32[1]{0}', space=sflag, size = 0x4, scoped, tag = 'scoped memory for tpu_custom_call.1']
    %7 = vsyncpa [#allocation3], 0
    // Predicated region
    $region2: #{tpu_custom_call.1} parent=1 // pred_check
      _
    $region3: #{tpu_custom_call.1} parent=1 // pred_check_branch
      %9 = sbr.rel (0) target = $region5
    $region4: #{tpu_custom_call.1} parent=1 // pred_region
      _
    $region5: #{tpu_custom_call.1} parent=1 // pred_fallthru
      _
    // Predicated region
    $region6: #{tpu_custom_call.1} parent=1 // pred_check
      _
    $region7: #{tpu_custom_call.1} parent=1 // pred_check_branch
      %11 = sbr.rel (0) target = $region9
    $region8: #{tpu_custom_call.1} parent=1 // pred_region
      _
    $region9: #{tpu_custom_call.1} parent=1 // pred_fallthru
      _
    %v12 = vld [vmem:[%s0] sm:$0xff]
    %v13 = vld [vmem:[%s0 + $0x8] sm:$0xff]
    %v14 = vld [vmem:[%s0 + $0x10] sm:$0xf]
    %v15 = vld [vmem:[%s1] sm:$0xff]
    %v16 = vld [vmem:[%s1 + $0x8] sm:$0xff]
    %v17 = vld [vmem:[%s1 + $0x10] sm:$0xf]
    %vm18 = vcmask 261120
    %v19 = vsel %vm18, %v12, -inf
    %20 = vmax.xlane.f32.xlu0 %v19
    %v21 = vpop.xlane.xlu0 %20
    %v22 = vsel %vm18, %v13, -inf
    %23 = vmax.xlane.f32.xlu0 %v22
    %v24 = vpop.xlane.xlu0 %23
    %vm25 = vcmask 257024
    %v26 = vsel %vm25, %v14, -inf
    %27 = vmax.xlane.f32.xlu0 %v26
    %v28 = vpop.xlane.xlu0 %27
    %v29 = vsub.f32 %v12, %v21
    %v30 = vsub.f32 %v13, %v24
    %v31 = vsub.f32 %v14, %v28
    %v32 = vmul.f32 %v29, 1.442695
    %v33 = vpow.pop %v32
    %v34 = vmul.f32 %v30, 1.442695
    %v35 = vpow.pop %v34
    %v36 = vmul.f32 %v31, 1.442695
    %v37 = vpow.pop %v36
    %v38 = vsel %vm18, %v33, 0.0
    %39 = vadd.xlane.f32.xlu0 %v38
    %v40 = vpop.xlane.xlu0 %39
    %v41 = vsel %vm18, %v35, 0.0
    %42 = vadd.xlane.f32.xlu0 %v41
    %v43 = vpop.xlane.xlu0 %42
    %v44 = vsel %vm25, %v37, 0.0
    %45 = vadd.xlane.f32.xlu0 %v44
    %v46 = vpop.xlane.xlu0 %45
    %v47 = vlaneseq
    %v48 = vand.u32 %v47, 127
    %49 = vset.pattern.permute.xlu0 0
    %50 = vperm.xlu0 %49, %v15
    %v51 = vpop.permute.xlu0 %50
    %52 = vset.pattern.permute.xlu0 0
    %53 = vperm.xlu0 %52, %v16
    %v54 = vpop.permute.xlu0 %53
    %55 = vset.pattern.permute.xlu0 0
    %56 = vperm.xlu0 %55, %v17
    %v57 = vpop.permute.xlu0 %56
    %vm58 = vcmp.eq.s32.totalorder %v48, %v51
    %vm59 = vcmp.eq.s32.totalorder %v48, %v54
    %vm60 = vcmp.eq.s32.totalorder %v48, %v57
    %v61 = vsel %vm58, %v12, 0.0
    %v62 = vsel %vm59, %v13, 0.0
    %v63 = vsel %vm60, %v14, 0.0
    %v64 = vsel %vm18, %v61, 0.0
    %65 = vadd.xlane.f32.xlu0 %v64
    %v66 = vpop.xlane.xlu0 %65
    %v67 = vsel %vm18, %v62, 0.0
    %68 = vadd.xlane.f32.xlu0 %v67
    %v69 = vpop.xlane.xlu0 %68
    %v70 = vsel %vm25, %v63, 0.0
    %71 = vadd.xlane.f32.xlu0 %v70
    %v72 = vpop.xlane.xlu0 %71
    %v73 = vlog2.pop %v40
    %v74 = vmul.f32 %v73, 0.6931472
    %v75 = vlog2.pop %v43
    %v76 = vmul.f32 %v75, 0.6931472
    %v77 = vlog2.pop %v46
    %v78 = vmul.f32 %v77, 0.6931472
    %v79 = vadd.f32 %v74, %v21
    %v80 = vadd.f32 %v76, %v24
    %v81 = vadd.f32 %v78, %v28
    %v82 = vsub.f32 %v79, %v66
    %v83 = vsub.f32 %v80, %v69
    %v84 = vsub.f32 %v81, %v72
    %vm85 = vcmask 7168
    %v86 = vsel %vm85, %v82, 0.0
    %v87 = vsel %vm85, %v83, 0.0
    %v88 = vadd.f32 %v86, %v87
    %vm89 = vcmask 3072
    %v90 = vsel %vm89, %v84, 0.0
    %v91 = vadd.f32 %v88, %v90
    %92 = vadd.xlane.f32.xlu0 %v91
    %v93 = vpop.xlane.xlu0 %92
    %v94 = vrot.slane %v93, 4
    %v95 = vadd.f32 %v93, %v94
    %v96 = vrot.slane %v95, 2
    %v97 = vadd.f32 %v95, %v96
    %v98 = vrot.slane %v97, 1
    %v99 = vadd.f32 %v97, %v98
    %s100 = vtos %v99
    %v101 = vstv %s100
    %102 = vst [vmem:[#allocation2] sm:$0x1] %v101
    // Predicated region
    $region10: #{tpu_custom_call.1} parent=1 // pred_check
      _
    $region11: #{tpu_custom_call.1} parent=1 // pred_check_branch
      %104 = sbr.rel (0) target = $region13
    $region12: #{tpu_custom_call.1} parent=1 // pred_region
      %s106 = ssub.s32 16, 16
      %107 = vsyncadd [#allocation3], %s106
      %s109 = sshll.u32 [#allocation2], 4
      %s110 = int_to_ptr.vmem [resolvable:$true] %s109
      %112 = dma.vmem_to_hbm [thread:$0]  %s110, 16, %s2, [#allocation3]
    $region13: #{tpu_custom_call.1} parent=1 // pred_fallthru
      _
    // Predicated region
    $region14: #{tpu_custom_call.1} parent=1 // pred_check
      _
    $region15: #{tpu_custom_call.1} parent=1 // pred_check_branch
      %114 = sbr.rel (0) target = $region17
    $region16: #{tpu_custom_call.1} parent=1 // pred_region
      %115 = dma.done [#allocation3], 16
    $region17: #{tpu_custom_call.1} parent=1 // pred_fallthru
      _
    %116 = vsyncpa [#allocation3], 1

</llo_original>
